<compile_context>
chip_gen: v5e
topology: v5e:2x2
jax: 0.10.0
libtpu: 0.0.40
codegen_flags: <defaults>
</compile_context>

<pallas_src>
import jax
import jax.numpy as jnp
from jax.experimental import pallas as pl
from jax.experimental.pallas import tpu as pltpu


def _round_up(x, m):
    return ((x + m - 1) // m) * m


def _tile_footprint_bytes(tm, tn, tk):
    # Double-buffered inputs (x worst-case f32, weight bf16, bias f32) plus the
    # double-buffered f32 output block.
    x_b = tm * tk * 4
    w_b = tk * tn * 2
    b_b = tn * 4
    o_b = tm * tn * 4
    return 2 * (x_b + w_b + b_b + o_b)


def _vmem_budget():
    try:
        cap = pltpu.get_tpu_info().vmem_capacity_bytes
    except Exception:
        cap = 64 << 20                               # conservative (v7x per-TC)
    vmem_limit = min(cap * 3 // 4, 96 << 20)         # v5e/v6e: 96 MiB, v7x: 48 MiB
    tile_budget = min(vmem_limit // 2, 48 << 20)     # leave headroom for Mosaic
    return int(vmem_limit), int(tile_budget)


def _select_tiles(B, D_in, D_out, budget):
    Mp = _round_up(max(B, 1), 8)
    Kp = _round_up(D_in, 128)
    Np = _round_up(D_out, 128)

    tm = min(512, Mp)

    # Small-batch / weight-streaming fast path: a single K step streams each
    # weight byte from HBM exactly once and needs no accumulator.
    if _tile_footprint_bytes(tm, 128, Kp) <= budget:
        tk = Kp
    else:
        tk = 1024
        while tk > 128 and _tile_footprint_bytes(tm, 128, tk) > budget:
            tk //= 2

    # Largest lane-dense N tile that fits the budget; if there is only one M
    # block, keep >= 2 N blocks (when D_out allows) so both v7x TCs get work.
    tn = 128
    for cand in (256, 512, 1024):
        if cand > Np:
            break
        if _tile_footprint_bytes(tm, cand, tk) > budget:
            break
        if Mp <= tm and cand >= Np:
            break
        tn = cand
    return tm, tn, tk


def _linear_kernel_single_k(x_ref, w_ref, b_ref, o_ref):
    # x_ref: (tm, K), w_ref: (K, tn) pre-transposed bf16, b_ref: (1, tn) f32,
    # o_ref: (tm, tn) f32.  Whole contraction in one MXU pass, fused bias add.
    a = x_ref[...].astype(jnp.bfloat16)
    w = w_ref[...].astype(jnp.bfloat16)
    o_ref[...] = jnp.dot(a, w, preferred_element_type=jnp.float32) + b_ref[...]


def _linear_kernel_mnk(x_ref, w_ref, b_ref, o_ref):
    # General tiled-MNK path: o_ref's (i, j) block stays resident across the K
    # axis, so accumulate directly into it (no VMEM scratch).  k == 0 seeds the
    # accumulator with the bias, so no separate finalize step is needed.
    k = pl.program_id(2)

    @pl.when(k == 0)
    def _():
        o_ref[...] = jnp.broadcast_to(b_ref[...], o_ref.shape)

    a = x_ref[...].astype(jnp.bfloat16)
    w = w_ref[...].astype(jnp.bfloat16)
    o_ref[...] += jnp.dot(a, w, preferred_element_type=jnp.float32)


def mock_model_forward(x, weight, bias):
    """y = x @ weight.T + bias  (PyTorch nn.Linear semantics).

    x:      (..., D_in)    float32
    weight: (D_out, D_in)  float32  (PyTorch layout; NOT pre-transposed here)
    bias:   (D_out,)       float32
    returns (..., D_out)   x.dtype
    """
    D_out, D_in = weight.shape
    lead_shape = x.shape[:-1]
    x2 = x.reshape(-1, D_in)
    B = x2.shape[0]

    vmem_limit, budget = _vmem_budget()
    tm, tn, tk = _select_tiles(B, D_in, D_out, budget)

    M = _round_up(B, tm)
    N = _round_up(D_out, tn)
    K = _round_up(D_in, tk)

    # x: pass through untouched (kernel casts to bf16) when already tile
    # aligned, otherwise one zero-padded bf16 copy.
    if (M, K) == (B, D_in):
        x_arg = x2
    else:
        x_arg = jnp.zeros((M, K), jnp.bfloat16).at[:B, :D_in].set(
            x2.astype(jnp.bfloat16))

    # Weight: a padded copy is unavoidable (PyTorch (D_out, D_in) layout and
    # D_out=10 is not lane-aligned), so write it pre-transposed as (K, N) bf16 —
    # the MXU's canonical orientation.  For repeated inference calls these two
    # slabs could be prepared once and reused.
    w_arg = jnp.zeros((K, N), jnp.bfloat16).at[:D_in, :D_out].set(
        weight.T.astype(jnp.bfloat16))
    b_arg = jnp.zeros((1, N), jnp.float32).at[0, :D_out].set(
        bias.astype(jnp.float32))

    mg, ng, kg = M // tm, N // tn, K // tk

    flops = 2 * M * N * K
    bytes_accessed = (
        x_arg.size * x_arg.dtype.itemsize * ng   # x re-read once per N block
        + w_arg.size * 2 * mg                    # w re-read once per M block
        + b_arg.size * 4 * mg
        + M * N * 4                              # output written once
    )

    if kg == 1:
        kernel = _linear_kernel_single_k
        grid = (mg, ng)
        in_specs = [
            pl.BlockSpec((tm, tk), lambda i, j: (i, 0)),   # x tile
            pl.BlockSpec((tk, tn), lambda i, j: (0, j)),   # weight (K, N) tile
            pl.BlockSpec((1, tn), lambda i, j: (0, j)),    # bias tile
        ]
        out_specs = pl.BlockSpec((tm, tn), lambda i, j: (i, j))
        dims = ("parallel", "parallel")
    else:
        kernel = _linear_kernel_mnk
        grid = (mg, ng, kg)
        in_specs = [
            pl.BlockSpec((tm, tk), lambda i, j, k: (i, k)),
            pl.BlockSpec((tk, tn), lambda i, j, k: (k, j)),
            pl.BlockSpec((1, tn), lambda i, j, k: (0, j)),
        ]
        out_specs = pl.BlockSpec((tm, tn), lambda i, j, k: (i, j))
        dims = ("parallel", "parallel", "arbitrary")

    out = pl.pallas_call(
        kernel,
        out_shape=jax.ShapeDtypeStruct((M, N), jnp.float32),
        grid_spec=pltpu.PrefetchScalarGridSpec(
            num_scalar_prefetch=0,
            grid=grid,
            in_specs=in_specs,
            out_specs=out_specs,
        ),
        compiler_params=pltpu.CompilerParams(
            dimension_semantics=dims,
            vmem_limit_bytes=vmem_limit,
        ),
        cost_estimate=pl.CostEstimate(
            flops=flops, transcendentals=0, bytes_accessed=bytes_accessed),
    )(x_arg, w_arg, b_arg)

    y = out[:B, :D_out].astype(x.dtype)
    return y.reshape(*lead_shape, D_out)


if __name__ == "__main__":
    # Small shapes consistent with MockModel(input_dim=32, output_dim=10).
    B, D_in, D_out = 8, 32, 10

    key = jax.random.PRNGKey(0)
    kx, kw, kb = jax.random.split(key, 3)

    x = jax.random.normal(kx, (B, D_in), dtype=jnp.float32)
    # Deterministic init mimicking nn.Linear's uniform(-1/sqrt(fan_in), ...).
    bound = 1.0 / jnp.sqrt(jnp.float32(D_in))
    weight = jax.random.uniform(kw, (D_out, D_in), jnp.float32, -bound, bound)
    bias = jax.random.uniform(kb, (D_out,), jnp.float32, -bound, bound)

    y = mock_model_forward(x, weight, bias)
    jax.block_until_ready(y)

    # Correctness vs plain-JAX f32 reference (kernel uses bf16 MXU inputs with
    # f32 accumulation, so allow bf16-level input-rounding error).
    y_ref = x @ weight.T + bias
    assert y.shape == (B, D_out)
    assert jnp.allclose(y, y_ref, atol=2e-2, rtol=2e-2), (
        float(jnp.max(jnp.abs(y - y_ref))))

    print("KERNEL_OK")
</pallas_src>

<mosaic_0001>
module attributes {stable_mosaic.version = 11 : i64} {
  func.func @_linear_kernel_single_k(%arg0: i32, %arg1: i32, %arg2: memref<8x128xbf16, #tpu.memory_space<vmem>>, %arg3: memref<128x128xbf16, #tpu.memory_space<vmem>>, %arg4: memref<1x128xf32, #tpu.memory_space<vmem>>, %arg5: memref<8x128xf32, #tpu.memory_space<vmem>>) attributes {dimension_semantics = [#tpu.dimension_semantics<parallel>, #tpu.dimension_semantics<parallel>], iteration_bounds = array<i64: 1, 1>, scalar_prefetch = 0 : i64, scratch_operands = 0 : i64, tpu.core_type = #tpu.core_type<tc>, window_params = [{transform_indices = @transform_0, window_bounds = array<i64: 8, 128>}, {transform_indices = @transform_1, window_bounds = array<i64: 128, 128>}, {transform_indices = @transform_2, window_bounds = array<i64: 1, 128>}, {transform_indices = @transform_3, window_bounds = array<i64: 8, 128>}]} {
    %c0 = arith.constant 0 : index
    %c0_0 = arith.constant 0 : index
    %0 = vector.load %arg2[%c0, %c0_0] : memref<8x128xbf16, #tpu.memory_space<vmem>>, vector<8x128xbf16>
    %c0_1 = arith.constant 0 : index
    %c0_2 = arith.constant 0 : index
    %1 = vector.load %arg3[%c0_1, %c0_2] : memref<128x128xbf16, #tpu.memory_space<vmem>>, vector<128x128xbf16>
    %cst = arith.constant dense<0.000000e+00> : vector<8x128xf32>
    %2 = tpu.matmul %0, %1, %cst {dimension_numbers = #tpu.dot_dimension_numbers<[1], [0], [0], [1], [0, 0, 1, 1], [], []>} : vector<8x128xbf16>, vector<128x128xbf16>, vector<8x128xf32> -> vector<8x128xf32>
    %c0_3 = arith.constant 0 : index
    %c0_4 = arith.constant 0 : index
    %3 = vector.load %arg4[%c0_3, %c0_4] : memref<1x128xf32, #tpu.memory_space<vmem>>, vector<1x128xf32>
    %4 = vector.broadcast %3 : vector<1x128xf32> to vector<8x128xf32>
    %5 = arith.addf %2, %4 : vector<8x128xf32>
    %c0_5 = arith.constant 0 : index
    %c0_6 = arith.constant 0 : index
    %6 = vector.load %arg5[%c0_5, %c0_6] : memref<8x128xf32, #tpu.memory_space<vmem>>, vector<8x128xf32>
    tpu.vector_store %arg5[%c0_5, %c0_6], %5 {strides = array<i32>} : memref<8x128xf32, #tpu.memory_space<vmem>>, vector<8x128xf32>,
    return
  }
  func.func @transform_0(%arg0: i32, %arg1: i32) -> (i32, i32) {
    %c0_i32 = arith.constant 0 : i32
    %c0_i32_0 = arith.constant 0 : i32
    return %arg0, %c0_i32 : i32, i32
  }
  func.func @transform_1(%arg0: i32, %arg1: i32) -> (i32, i32) {
    %c0_i32 = arith.constant 0 : i32
    %c0_i32_0 = arith.constant 0 : i32
    return %c0_i32, %arg1 : i32, i32
  }
  func.func @transform_2(%arg0: i32, %arg1: i32) -> (i32, i32) {
    %c0_i32 = arith.constant 0 : i32
    %c0_i32_0 = arith.constant 0 : i32
    return %c0_i32, %arg1 : i32, i32
  }
  func.func @transform_3(%arg0: i32, %arg1: i32) -> (i32, i32) {
    %c0_i32 = arith.constant 0 : i32
    return %arg0, %arg1 : i32, i32
  }
}

</mosaic_0001>

<llo_original>
// kernel: tpu_custom_call.1
$region0: #{tpu_custom_call.1}
  #allocation0 [shape = 'u32[]', space=smem, size = 0x4, offset = 0x4, fixed_abs, tag = 'smem constant byte address 0x4 - core index']
  #allocation1 [shape = 'u32[72,128]{1,0:T(1,128)}', space=vmem, size = 0x9000, scoped, tag = 'internal scratch']
  %s0 = inlined_call_operand.hbm [shape: bf16[8,128], index: 0, kind: input, shape index: {}]
  %s1 = inlined_call_operand.hbm [shape: bf16[128,128], index: 1, kind: input, shape index: {}]
  %s2 = inlined_call_operand.vmem [shape: f32[1,128], index: 2, kind: input, shape index: {}]
  %s3 = inlined_call_operand.hbm [shape: f32[8,128], index: 3, kind: output, shape index: {}]
  %s4 = sld [smem:[#allocation0]]
  $region30: #{tpu_custom_call.1} parent=0
    _
  %s6 = ssub.s32 1, %s4
  %s7 = scalar_select 0, %s6, %s4
  $region1: #{tpu_custom_call.1} parent=0
    #allocation2 [shape = 'u8[2048]{0}', space=vmem, size = 0x800, scoped, tag = 'input window, operand 0, single buffered']
    #allocation3 [shape = 's32[1]{0}', space=sflag, size = 0x4, scoped, tag = 'scoped memory for tpu_custom_call.1']
    #allocation4 [shape = 's32[1]{0}', space=sflag, size = 0x4, scoped, tag = 'scoped memory for tpu_custom_call.1']
    #allocation5 [shape = 'u8[32768]{0}', space=vmem, size = 0x8000, scoped, tag = 'input window, operand 1, single buffered']
    #allocation6 [shape = 's32[1]{0}', space=sflag, size = 0x4, scoped, tag = 'scoped memory for tpu_custom_call.1']
    #allocation7 [shape = 'u8[4096]{0}', space=vmem, size = 0x1000, scoped, tag = 'output window, operand 0, single buffered']
    %8 = vsyncpa [#allocation3], 0
    %9 = vsyncpa [#allocation6], 0
    %10 = vsyncpa [#allocation4], 0
    // Predicated region
    $region2: #{tpu_custom_call.1} parent=1 // pred_check
      _
    $region3: #{tpu_custom_call.1} parent=1 // pred_check_branch
      %12 = sbr.rel (0) target = $region5
    $region4: #{tpu_custom_call.1} parent=1 // pred_region
      %14 = vsyncadd [#allocation3], 0
      %s16 = sshll.u32 %s0, 4
      %s17 = int_to_ptr.hbm [resolvable:$true] %s16
      %s18 = sshll.u32 [#allocation2], 4
      %s19 = int_to_ptr.vmem [resolvable:$true] %s18
      %21 = dma.hbm_to_vmem [thread:$0]  %s17, 64, %s19, [#allocation3]
    $region5: #{tpu_custom_call.1} parent=1 // pred_fallthru
      _
    // Predicated region
    $region6: #{tpu_custom_call.1} parent=1 // pred_check
      _
    $region7: #{tpu_custom_call.1} parent=1 // pred_check_branch
      %23 = sbr.rel (0) target = $region9
    $region8: #{tpu_custom_call.1} parent=1 // pred_region
      %25 = vsyncadd [#allocation6], 0
      %s26 = sshll.u32 %s1, 4
      %s27 = int_to_ptr.hbm [resolvable:$true] %s26
      %s28 = sshll.u32 [#allocation5], 4
      %s29 = int_to_ptr.vmem [resolvable:$true] %s28
      %34 = dma.hbm_to_vmem [thread:$0]  %s27, 1024, %s29, [#allocation6], 64, 64, 4
    $region9: #{tpu_custom_call.1} parent=1 // pred_fallthru
      _
    // Predicated region
    $region10: #{tpu_custom_call.1} parent=1 // pred_check
      _
    $region11: #{tpu_custom_call.1} parent=1 // pred_check_branch
      %36 = sbr.rel (0) target = $region13
    $region12: #{tpu_custom_call.1} parent=1 // pred_region
      _
    $region13: #{tpu_custom_call.1} parent=1 // pred_fallthru
      _
    // Predicated region
    $region14: #{tpu_custom_call.1} parent=1 // pred_check
      _
    $region15: #{tpu_custom_call.1} parent=1 // pred_check_branch
      %38 = sbr.rel (0) target = $region17
    $region16: #{tpu_custom_call.1} parent=1 // pred_region
      %40 = dma.done [#allocation3], 64
    $region17: #{tpu_custom_call.1} parent=1 // pred_fallthru
      _
    // Predicated region
    $region18: #{tpu_custom_call.1} parent=1 // pred_check
      _
    $region19: #{tpu_custom_call.1} parent=1 // pred_check_branch
      %42 = sbr.rel (0) target = $region21
    $region20: #{tpu_custom_call.1} parent=1 // pred_region
      %44 = dma.done [#allocation6], 1024
    $region21: #{tpu_custom_call.1} parent=1 // pred_fallthru
      _
    %v45 = vld [vmem:[#allocation2] sm:$0xf]
    %v46 = vld [vmem:[#allocation5] sm:$0xf]
    %v47 = vld [vmem:[#allocation5 + $0x4] sm:$0xf]
    %v48 = vld [vmem:[#allocation5 + $0x8] sm:$0xf]
    %v49 = vld [vmem:[#allocation5 + $0xc] sm:$0xf]
    %v50 = vld [vmem:[#allocation5 + $0x10] sm:$0xf]
    %v51 = vld [vmem:[#allocation5 + $0x14] sm:$0xf]
    %v52 = vld [vmem:[#allocation5 + $0x18] sm:$0xf]
    %v53 = vld [vmem:[#allocation5 + $0x1c] sm:$0xf]
    %v54 = vld [vmem:[#allocation5 + $0x20] sm:$0xf]
    %v55 = vld [vmem:[#allocation5 + $0x24] sm:$0xf]
    %v56 = vld [vmem:[#allocation5 + $0x28] sm:$0xf]
    %v57 = vld [vmem:[#allocation5 + $0x2c] sm:$0xf]
    %v58 = vld [vmem:[#allocation5 + $0x30] sm:$0xf]
    %v59 = vld [vmem:[#allocation5 + $0x34] sm:$0xf]
    %v60 = vld [vmem:[#allocation5 + $0x38] sm:$0xf]
    %v61 = vld [vmem:[#allocation5 + $0x3c] sm:$0xf]
    %v62 = vld [vmem:[%s2] sm:$0x1]
    %v64 = vperm.slane %v62, 0
    %v82 = vunpack.c.l.b16 %v46
    %v83 = vunpack.c.l.b16 %v47
    %v84 = vunpack.c.l.b16 %v48
    %v85 = vunpack.c.l.b16 %v49
    %v86 = vunpack.c.l.b16 %v50
    %v87 = vunpack.c.l.b16 %v51
    %v88 = vunpack.c.l.b16 %v52
    %v89 = vunpack.c.l.b16 %v53
    %v90 = vunpack.c.l.b16 %v54
    %v91 = vunpack.c.l.b16 %v55
    %v92 = vunpack.c.l.b16 %v56
    %v93 = vunpack.c.l.b16 %v57
    %v94 = vunpack.c.l.b16 %v58
    %v95 = vunpack.c.l.b16 %v59
    %v96 = vunpack.c.l.b16 %v60
    %v97 = vunpack.c.l.b16 %v61
    %v98 = vpack.c.b16 %v83, %v82
    %v99 = vpack.c.b16 %v85, %v84
    %v100 = vpack.c.b16 %v87, %v86
    %v101 = vpack.c.b16 %v89, %v88
    %v102 = vpack.c.b16 %v91, %v90
    %v103 = vpack.c.b16 %v93, %v92
    %v104 = vpack.c.b16 %v95, %v94
    %v105 = vpack.c.b16 %v97, %v96
    %114 = vmatpush.bf16.msra.mxu0 %v105
    %115 = vmatpush.bf16.msra.mxu0 %v104
    %116 = vmatpush.bf16.msra.mxu0 %v103
    %117 = vmatpush.bf16.msra.mxu0 %v102
    %118 = vmatpush.bf16.msra.mxu0 %v101
    %119 = vmatpush.bf16.msra.mxu0 %v100
    %120 = vmatpush.bf16.msra.mxu0 %v99
    %121 = vmatpush.bf16.msra.mxu0 %v98
    %122 = vmatmul.bf16.gmra.mxu0 %v45
    %v123 = vpop.f32.mrf.mxu0
    %v124 = vadd.f32 %v64, %v123
    %v125 = vpop.f32.mrf.mxu0
    %126 = vdwg.mxu0
    %127 = vst [vmem:[#allocation7] sm:$0xff] %v124
    // Predicated region
    $region22: #{tpu_custom_call.1} parent=1 // pred_check
      _
    $region23: #{tpu_custom_call.1} parent=1 // pred_check_branch
      %129 = sbr.rel (0) target = $region25
    $region24: #{tpu_custom_call.1} parent=1 // pred_region
      %131 = vsyncadd [#allocation4], 0
      %s133 = sshll.u32 [#allocation7], 4
      %s134 = int_to_ptr.vmem [resolvable:$true] %s133
      %s135 = sshll.u32 %s3, 4
      %s136 = int_to_ptr.hbm [resolvable:$true] %s135
      %138 = dma.vmem_to_hbm [thread:$0]  %s134, 128, %s136, [#allocation4]
    $region25: #{tpu_custom_call.1} parent=1 // pred_fallthru
      _
    // Predicated region
    $region26: #{tpu_custom_call.1} parent=1 // pred_check
      _
    $region27: #{tpu_custom_call.1} parent=1 // pred_check_branch
      %140 = sbr.rel (0) target = $region29
    $region28: #{tpu_custom_call.1} parent=1 // pred_region
      %142 = dma.done [#allocation4], 128
    $region29: #{tpu_custom_call.1} parent=1 // pred_fallthru
      _
    %143 = vsyncpa [#allocation3], 1
    %144 = vsyncpa [#allocation6], 1
    %145 = vsyncpa [#allocation4], 1

</llo_original>
